<compile_context>
chip_gen: v6e
topology: v6e:2x2x1
jax: 0.10.0
libtpu: 0.0.40
codegen_flags: <defaults>
</compile_context>

<pallas_src>
import functools
import math

import jax
import jax.numpy as jnp
from jax.experimental import pallas as pl
from jax.experimental.pallas import tpu as pltpu


# ---------------------------------------------------------------------------
# Kernel 1: fused Q/K/V projection (single MXU stream with N = 3H).
# ---------------------------------------------------------------------------
def qkv_projection_kernel(x_ref, w_ref, b_ref, q_ref, k_ref, v_ref, *, hidden):
    # One matmul instead of three: [tile_rows, H] @ [H, 3H], f32 accumulation.
    acc = jnp.dot(x_ref[...], w_ref[...], preferred_element_type=jnp.float32)
    acc = acc + b_ref[...]                        # f32 bias add
    h = hidden
    # Static column split into the three lane-dense [tile_rows, H] outputs.
    q_ref[...] = acc[:, 0 * h:1 * h].astype(q_ref.dtype)
    k_ref[...] = acc[:, 1 * h:2 * h].astype(k_ref.dtype)
    v_ref[...] = acc[:, 2 * h:3 * h].astype(v_ref.dtype)


# ---------------------------------------------------------------------------
# Kernel 2: per-(batch, head-group, q-tile) scaled dot-product attention.
# ---------------------------------------------------------------------------
def attention_kernel(q_ref, k_ref, v_ref, mask_ref, ctx_ref, scores_ref, *,
                     head_dim, heads_per_block):
    mask = mask_ref[...].astype(jnp.float32)          # (1, S) additive row mask

    for h in range(heads_per_block):                  # static, small (1..nh)
        col = slice(h * head_dim, (h + 1) * head_dim)
        q = q_ref[:, col]                             # (tq, dh), already /sqrt(dh)
        k = k_ref[:, col]                             # (S,  dh)
        v = v_ref[:, col]                             # (S,  dh)

        # scores = (Q/sqrt(dh)) K^T + mask.  Contract trailing dims of both
        # operands -> no explicit K transpose / VMEM relayout before the MXU.
        s = jax.lax.dot_general(q, k, (((1,), (1,)), ((), ())),
                                preferred_element_type=jnp.float32)
        s = s + mask                                  # (tq, S) + (1, S) broadcast
        scores_ref[h] = s.astype(scores_ref.dtype)    # pre-softmax (module output)

        # Numerically-stable softmax; normalization folded after the PV matmul
        # so the elementwise divide is O(tq*dh) instead of O(tq*S).
        m = jnp.max(s, axis=-1, keepdims=True)
        p = jnp.exp(s - m)
        denom = jnp.sum(p, axis=-1, keepdims=True)
        # TODO(synk): attention dropout is identity in eval mode; training mode
        #             would need pltpu.prng_seed / pltpu.prng_random_bits masking.
        # TODO(synk): head_mask is None in this configuration, so not applied.
        ctx = jnp.dot(p.astype(v.dtype), v, preferred_element_type=jnp.float32)
        ctx = ctx * (1.0 / denom)
        ctx_ref[:, col] = ctx.astype(ctx_ref.dtype)


# ---------------------------------------------------------------------------
# Wrapper
# ---------------------------------------------------------------------------
def bert_self_attention(hidden_states, attention_mask, wq, bq, wk, bk, wv, bv,
                        *, num_attention_heads, tile_rows=None, q_tile=None,
                        compute_dtype=None, vmem_limit_bytes=48 * 1024 * 1024):
    """hidden_states: [B, S, H]; attention_mask: standard additive [B, 1, 1, S].

    Returns (context_layer [B, S, H], attention_scores [B, nh, S, S]) matching
    the torch module's (context_layer, attention_scores) outputs.  Weights
    wq/wk/wv are stored as [H_in, H_out] (torch weight.T).  Set
    compute_dtype=jnp.bfloat16 for bf16 MXU matmuls (f32 accumulation kept).
    """
    B, S, H = hidden_states.shape
    nh = num_attention_heads
    assert H % nh == 0, "hidden size must be a multiple of num heads"
    dh = H // nh
    M = B * S
    out_dtype = hidden_states.dtype
    if compute_dtype is None:
        compute_dtype = hidden_states.dtype       # bf16 inputs -> bf16 MXU path
    scale = 1.0 / math.sqrt(dh)

    # ---- stage 1: fused Q/K/V projection over the [rows, H] slab ----------
    if tile_rows is None:
        # 512-row tiles: good HBM-roofline fraction, multi-step pipelined grid,
        # comfortably inside v7x's 64 MiB VMEM with the resident [H,3H] weight.
        tile_rows = min(512, M)
    m_pad = -(-M // tile_rows) * tile_rows
    x2 = hidden_states.reshape(M, H)
    if m_pad != M:
        # Pad rows instead of falling back to one full-M tile (keeps pipeline).
        x2 = jnp.pad(x2, ((0, m_pad - M), (0, 0)))
    x2 = x2.astype(compute_dtype)

    # Fold 1/sqrt(dh) into the Q projection; concatenate into one [H, 3H]
    # weight so stage 1 is a single MXU stream with a lane-dense output.
    w_fused = jnp.concatenate([wq * scale, wk, wv], axis=1).astype(compute_dtype)
    b_fused = jnp.concatenate([bq * scale, bk, bv]).reshape(1, 3 * H).astype(jnp.float32)

    row_spec = pl.BlockSpec((tile_rows, H), lambda i: (i, 0))
    qkv_shape = jax.ShapeDtypeStruct((m_pad, H), compute_dtype)

    q2, k2, v2 = pl.pallas_call(
        functools.partial(qkv_projection_kernel, hidden=H),
        out_shape=(qkv_shape, qkv_shape, qkv_shape),
        grid_spec=pltpu.PrefetchScalarGridSpec(
            num_scalar_prefetch=0,
            grid=(m_pad // tile_rows,),
            in_specs=[pl.BlockSpec((tile_rows, H), lambda i: (i, 0)),
                      pl.BlockSpec((H, 3 * H), lambda i: (0, 0)),   # resident weight
                      pl.BlockSpec((1, 3 * H), lambda i: (0, 0))],  # resident bias
            out_specs=[row_spec, row_spec, row_spec],
        ),
        compiler_params=pltpu.CompilerParams(
            dimension_semantics=("parallel",),
            vmem_limit_bytes=vmem_limit_bytes),
    )(x2, w_fused, b_fused)

    # ---- stage 2: attention directly on the [B, S, H] head-major slabs ----
    def as_bsh(t):
        return (t[:M] if m_pad != M else t).reshape(B, S, H)

    q3, k3, v3 = as_bsh(q2), as_bsh(k2), as_bsh(v2)   # no head transposes

    # Heads per grid step: pick hb so the q/k/v/ctx column blocks are 128-lane
    # dense (e.g. 2 heads at dh=64); otherwise use the full H width.
    if dh % 128 == 0:
        hb = 1
    elif 128 % dh == 0 and nh % (128 // dh) == 0:
        hb = 128 // dh
    else:
        hb = nh
    num_groups = nh // hb

    # Query tiling bounds VMEM/vreg pressure independent of S for long seqs.
    if q_tile is None:
        q_tile = S
        for cand in (512, 256, 128):
            if S % cand == 0:
                q_tile = cand
                break
    assert S % q_tile == 0
    num_q = S // q_tile

    # Standard BERT extended additive mask [B, 1, 1, S]; the (1, S) row is
    # broadcast against the (tq, S) scores INSIDE the kernel (no (B,S,S) blow-up).
    mask4 = jnp.broadcast_to(attention_mask, (B, 1, 1, S)).astype(jnp.float32)
    # TODO(synk): per-query-row masks ([B,1,S,S]) would need a (tq, S) mask spec.

    q_spec = pl.BlockSpec((None, q_tile, hb * dh), lambda b, g, qi: (b, qi, g))
    kv_spec = pl.BlockSpec((None, S, hb * dh), lambda b, g, qi: (b, 0, g))
    mask_spec = pl.BlockSpec((None, None, 1, S), lambda b, g, qi: (b, 0, 0, 0))
    ctx_spec = pl.BlockSpec((None, q_tile, hb * dh), lambda b, g, qi: (b, qi, g))
    scores_spec = pl.BlockSpec((None, hb, q_tile, S), lambda b, g, qi: (b, g, qi, 0))

    context, scores = pl.pallas_call(
        functools.partial(attention_kernel, head_dim=dh, heads_per_block=hb),
        out_shape=(jax.ShapeDtypeStruct((B, S, H), out_dtype),
                   jax.ShapeDtypeStruct((B, nh, S, S), out_dtype)),
        grid_spec=pltpu.PrefetchScalarGridSpec(
            num_scalar_prefetch=0,
            grid=(B, num_groups, num_q),   # K/V block constant over inner qi axis
            in_specs=[q_spec, kv_spec, kv_spec, mask_spec],
            out_specs=[ctx_spec, scores_spec],
        ),
        compiler_params=pltpu.CompilerParams(
            dimension_semantics=("parallel", "parallel", "parallel"),
            vmem_limit_bytes=vmem_limit_bytes),
    )(q3, k3, v3, mask4)
    # TODO(synk): on v7x verify megacore sharding of the leading parallel axes;
    #             if not engaged, switch the leading axis to pltpu.CORE_PARALLEL.

    # context is already [B, S, H] with torch's head-concatenated column order.
    return context, scores


if __name__ == "__main__":
    # Small shapes consistent with the module: batch=2, seq=8, hidden=32,
    # num_attention_heads=4 (head_dim=8).
    B, S, H, NH = 2, 8, 32, 4
    DH = H // NH

    key = jax.random.PRNGKey(0)
    ks = jax.random.split(key, 8)

    hidden_states = jax.random.normal(ks[0], (B, S, H), dtype=jnp.float32)
    # Standard BERT extended additive mask: 0 = attend, -10000 = masked.
    keep = jax.random.bernoulli(ks[1], 0.85, (B, 1, 1, S))
    attention_mask = jnp.where(keep, 0.0, -10000.0).astype(jnp.float32)

    # Deterministic synthetic parameters; weights stored [H_in, H_out].
    wq = jax.random.normal(ks[2], (H, H), dtype=jnp.float32) * 0.02
    wk = jax.random.normal(ks[3], (H, H), dtype=jnp.float32) * 0.02
    wv = jax.random.normal(ks[4], (H, H), dtype=jnp.float32) * 0.02
    bq = jax.random.normal(ks[5], (H,), dtype=jnp.float32) * 0.02
    bk = jax.random.normal(ks[6], (H,), dtype=jnp.float32) * 0.02
    bv = jax.random.normal(ks[7], (H,), dtype=jnp.float32) * 0.02

    # ---- pure-JAX reference of the torch forward ---------------------------
    def split(t):
        return t.reshape(B, S, NH, DH).transpose(0, 2, 1, 3)

    qr = split(hidden_states @ wq + bq)
    kr = split(hidden_states @ wk + bk)
    vr = split(hidden_states @ wv + bv)
    scores_ref = jnp.einsum('bhqd,bhkd->bhqk', qr, kr) / math.sqrt(DH)
    scores_ref = scores_ref + attention_mask              # (B,1,1,S) broadcast
    probs_ref = jax.nn.softmax(scores_ref, axis=-1)
    ctx_ref = jnp.einsum('bhqk,bhkd->bhqd', probs_ref, vr)
    ctx_ref = ctx_ref.transpose(0, 2, 1, 3).reshape(B, S, H)

    # ---- exact f32 path -----------------------------------------------------
    context, scores = bert_self_attention(
        hidden_states, attention_mask, wq, bq, wk, bk, wv, bv,
        num_attention_heads=NH)
    context = jax.block_until_ready(context)
    scores = jax.block_until_ready(scores)

    assert context.shape == (B, S, H)
    assert scores.shape == (B, NH, S, S)
    assert jnp.allclose(scores, scores_ref, atol=1e-4, rtol=1e-5), \
        "attention_scores mismatch vs reference (f32 path)"
    assert jnp.allclose(context, ctx_ref, atol=1e-4, rtol=1e-5), \
        "context_layer mismatch vs reference (f32 path)"

    # ---- native bf16 MXU path (f32 accumulation, looser tolerance) ---------
    ctx_bf16, scores_bf16 = bert_self_attention(
        hidden_states, attention_mask, wq, bq, wk, bk, wv, bv,
        num_attention_heads=NH, compute_dtype=jnp.bfloat16)
    ctx_bf16 = jax.block_until_ready(ctx_bf16)
    scores_bf16 = jax.block_until_ready(scores_bf16)

    assert jnp.allclose(scores_bf16, scores_ref, atol=3e-2, rtol=3e-2), \
        "attention_scores mismatch vs reference (bf16 path)"
    assert jnp.allclose(ctx_bf16, ctx_ref, atol=3e-2, rtol=3e-2), \
        "context_layer mismatch vs reference (bf16 path)"

    print("KERNEL_OK")
</pallas_src>

<mosaic_0001>
module attributes {stable_mosaic.version = 11 : i64} {
  func.func @qkv_projection_kernel(%arg0: i32, %arg1: memref<16x32xf32, #tpu.memory_space<vmem>>, %arg2: memref<32x96xf32, #tpu.memory_space<vmem>>, %arg3: memref<1x96xf32, #tpu.memory_space<vmem>>, %arg4: memref<16x32xf32, #tpu.memory_space<vmem>>, %arg5: memref<16x32xf32, #tpu.memory_space<vmem>>, %arg6: memref<16x32xf32, #tpu.memory_space<vmem>>) attributes {dimension_semantics = [#tpu.dimension_semantics<parallel>], iteration_bounds = array<i64: 1>, scalar_prefetch = 0 : i64, scratch_operands = 0 : i64, tpu.core_type = #tpu.core_type<tc>, window_params = [{transform_indices = @transform_0, window_bounds = array<i64: 16, 32>}, {pipeline_mode = #tpu.pipeline_mode<synchronous>, transform_indices = @transform_1, window_bounds = array<i64: 32, 96>}, {pipeline_mode = #tpu.pipeline_mode<synchronous>, transform_indices = @transform_2, window_bounds = array<i64: 1, 96>}, {transform_indices = @transform_3, window_bounds = array<i64: 16, 32>}, {transform_indices = @transform_4, window_bounds = array<i64: 16, 32>}, {transform_indices = @transform_5, window_bounds = array<i64: 16, 32>}]} {
    %c0 = arith.constant 0 : index
    %c0_0 = arith.constant 0 : index
    %0 = vector.load %arg1[%c0, %c0_0] : memref<16x32xf32, #tpu.memory_space<vmem>>, vector<16x32xf32>
    %c0_1 = arith.constant 0 : index
    %c0_2 = arith.constant 0 : index
    %1 = vector.load %arg2[%c0_1, %c0_2] : memref<32x96xf32, #tpu.memory_space<vmem>>, vector<32x96xf32>
    %cst = arith.constant dense<0.000000e+00> : vector<16x96xf32>
    %2 = tpu.matmul %0, %1, %cst {dimension_numbers = #tpu.dot_dimension_numbers<[1], [0], [0], [1], [0, 0, 1, 1], [], []>} : vector<16x32xf32>, vector<32x96xf32>, vector<16x96xf32> -> vector<16x96xf32>
    %c0_3 = arith.constant 0 : index
    %c0_4 = arith.constant 0 : index
    %3 = vector.load %arg3[%c0_3, %c0_4] : memref<1x96xf32, #tpu.memory_space<vmem>>, vector<1x96xf32>
    %4 = vector.broadcast %3 : vector<1x96xf32> to vector<16x96xf32>
    %5 = arith.addf %2, %4 : vector<16x96xf32>
    %6 = vector.extract_strided_slice %5 {offsets = [0, 0], sizes = [16, 32], strides = [1, 1]} : vector<16x96xf32> to vector<16x32xf32>
    %c0_5 = arith.constant 0 : index
    %c0_6 = arith.constant 0 : index
    %7 = vector.load %arg4[%c0_5, %c0_6] : memref<16x32xf32, #tpu.memory_space<vmem>>, vector<16x32xf32>
    tpu.vector_store %arg4[%c0_5, %c0_6], %6 {strides = array<i32>} : memref<16x32xf32, #tpu.memory_space<vmem>>, vector<16x32xf32>,
    %8 = vector.extract_strided_slice %5 {offsets = [0, 32], sizes = [16, 32], strides = [1, 1]} : vector<16x96xf32> to vector<16x32xf32>
    %c0_7 = arith.constant 0 : index
    %c0_8 = arith.constant 0 : index
    %9 = vector.load %arg5[%c0_7, %c0_8] : memref<16x32xf32, #tpu.memory_space<vmem>>, vector<16x32xf32>
    tpu.vector_store %arg5[%c0_7, %c0_8], %8 {strides = array<i32>} : memref<16x32xf32, #tpu.memory_space<vmem>>, vector<16x32xf32>,
    %10 = vector.extract_strided_slice %5 {offsets = [0, 64], sizes = [16, 32], strides = [1, 1]} : vector<16x96xf32> to vector<16x32xf32>
    %c0_9 = arith.constant 0 : index
    %c0_10 = arith.constant 0 : index
    %11 = vector.load %arg6[%c0_9, %c0_10] : memref<16x32xf32, #tpu.memory_space<vmem>>, vector<16x32xf32>
    tpu.vector_store %arg6[%c0_9, %c0_10], %10 {strides = array<i32>} : memref<16x32xf32, #tpu.memory_space<vmem>>, vector<16x32xf32>,
    return
  }
  func.func @transform_0(%arg0: i32) -> (i32, i32) {
    %c0_i32 = arith.constant 0 : i32
    %c0_i32_0 = arith.constant 0 : i32
    return %arg0, %c0_i32 : i32, i32
  }
  func.func @transform_1(%arg0: i32) -> (i32, i32) {
    %c0_i32 = arith.constant 0 : i32
    %c0_i32_0 = arith.constant 0 : i32
    %c0_i32_1 = arith.constant 0 : i32
    return %c0_i32, %c0_i32_0 : i32, i32
  }
  func.func @transform_2(%arg0: i32) -> (i32, i32) {
    %c0_i32 = arith.constant 0 : i32
    %c0_i32_0 = arith.constant 0 : i32
    %c0_i32_1 = arith.constant 0 : i32
    return %c0_i32, %c0_i32_0 : i32, i32
  }
  func.func @transform_3(%arg0: i32) -> (i32, i32) {
    %c0_i32 = arith.constant 0 : i32
    %c0_i32_0 = arith.constant 0 : i32
    return %arg0, %c0_i32 : i32, i32
  }
  func.func @transform_4(%arg0: i32) -> (i32, i32) {
    %c0_i32 = arith.constant 0 : i32
    %c0_i32_0 = arith.constant 0 : i32
    return %arg0, %c0_i32 : i32, i32
  }
  func.func @transform_5(%arg0: i32) -> (i32, i32) {
    %c0_i32 = arith.constant 0 : i32
    %c0_i32_0 = arith.constant 0 : i32
    return %arg0, %c0_i32 : i32, i32
  }
}

</mosaic_0001>

<llo_original>
// kernel: tpu_custom_call.1
$region0: #{tpu_custom_call.1}
  #allocation0 [shape = 'u32[]', space=smem, size = 0x4, offset = 0x4, fixed_abs, tag = 'smem constant byte address 0x4 - core index']
  #allocation1 [shape = 'u32[144,128]{1,0:T(1,128)}', space=vmem, size = 0x12000, scoped, tag = 'internal scratch']
  %s0 = inlined_call_operand.hbm [shape: f32[16,32], index: 0, kind: input, shape index: {}]
  %s1 = inlined_call_operand.hbm [shape: f32[32,96], index: 1, kind: input, shape index: {}]
  %s2 = inlined_call_operand.vmem [shape: f32[1,96], index: 2, kind: input, shape index: {}]
  %s3 = inlined_call_operand.hbm [shape: f32[16,32], index: 3, kind: output, shape index: {0}]
  %s4 = inlined_call_operand.hbm [shape: f32[16,32], index: 4, kind: output, shape index: {1}]
  %s5 = inlined_call_operand.hbm [shape: f32[16,32], index: 5, kind: output, shape index: {2}]
  %6 = xla_tuple %s3, %s4, %s5
  %s7 = sld [smem:[#allocation0]]
  $region46: #{tpu_custom_call.1} parent=0
    _
  %s9 = ssub.s32 1, %s7
  %s10 = scalar_select 0, %s9, %s7
  $region1: #{tpu_custom_call.1} parent=0
    #allocation2 [shape = 'u8[8192]{0}', space=vmem, size = 0x2000, scoped, tag = 'input window, operand 0, single buffered']
    #allocation3 [shape = 's32[1]{0}', space=sflag, size = 0x4, scoped, tag = 'scoped memory for tpu_custom_call.1']
    #allocation4 [shape = 's32[1]{0}', space=sflag, size = 0x4, scoped, tag = 'scoped memory for tpu_custom_call.1']
    #allocation5 [shape = 'u8[16384]{0}', space=vmem, size = 0x4000, scoped, tag = 'input window, operand 1, single buffered']
    #allocation6 [shape = 's32[1]{0}', space=sflag, size = 0x4, scoped, tag = 'scoped memory for tpu_custom_call.1']
    #allocation7 [shape = 'u8[8192]{0}', space=vmem, size = 0x2000, scoped, tag = 'output window, operand 0, single buffered']
    #allocation8 [shape = 'u8[8192]{0}', space=vmem, size = 0x2000, scoped, tag = 'output window, operand 1, single buffered']
    #allocation9 [shape = 's32[1]{0}', space=sflag, size = 0x4, scoped, tag = 'scoped memory for tpu_custom_call.1']
    #allocation10 [shape = 'u8[8192]{0}', space=vmem, size = 0x2000, scoped, tag = 'output window, operand 2, single buffered']
    %11 = vsyncpa [#allocation3], 0
    %12 = vsyncpa [#allocation6], 0
    %13 = vsyncpa [#allocation4], 0
    %14 = vsyncpa [#allocation9], 0
    // Predicated region
    $region2: #{tpu_custom_call.1} parent=1 // pred_check
      _
    $region3: #{tpu_custom_call.1} parent=1 // pred_check_branch
      %16 = sbr.rel (0) target = $region5
    $region4: #{tpu_custom_call.1} parent=1 // pred_region
      %s18 = ssub.s32 256, 256
      %19 = vsyncadd [#allocation3], %s18
      %s20 = sshll.u32 [#allocation2], 4
      %s21 = int_to_ptr.vmem [resolvable:$true] %s20
      %26 = dma.hbm_to_vmem [thread:$0]  %s0, 256, %s21, [#allocation3], 128, 128, 8
    $region5: #{tpu_custom_call.1} parent=1 // pred_fallthru
      _
    // Predicated region
    $region6: #{tpu_custom_call.1} parent=1 // pred_check
      _
    $region7: #{tpu_custom_call.1} parent=1 // pred_check_branch
      %28 = sbr.rel (0) target = $region9
    $region8: #{tpu_custom_call.1} parent=1 // pred_region
      %s30 = ssub.s32 512, 512
      %31 = vsyncadd [#allocation6], %s30
      %s32 = sshll.u32 [#allocation5], 4
      %s33 = int_to_ptr.vmem [resolvable:$true] %s32
      %38 = dma.hbm_to_vmem [thread:$0]  %s1, 512, %s33, [#allocation6], 128, 128, 8
    $region9: #{tpu_custom_call.1} parent=1 // pred_fallthru
      _
    // Predicated region
    $region10: #{tpu_custom_call.1} parent=1 // pred_check
      _
    $region11: #{tpu_custom_call.1} parent=1 // pred_check_branch
      %40 = sbr.rel (0) target = $region13
    $region12: #{tpu_custom_call.1} parent=1 // pred_region
      _
    $region13: #{tpu_custom_call.1} parent=1 // pred_fallthru
      _
    // Predicated region
    $region14: #{tpu_custom_call.1} parent=1 // pred_check
      _
    $region15: #{tpu_custom_call.1} parent=1 // pred_check_branch
      %42 = sbr.rel (0) target = $region17
    $region16: #{tpu_custom_call.1} parent=1 // pred_region
      %43 = dma.done [#allocation3], 256
    $region17: #{tpu_custom_call.1} parent=1 // pred_fallthru
      _
    // Predicated region
    $region18: #{tpu_custom_call.1} parent=1 // pred_check
      _
    $region19: #{tpu_custom_call.1} parent=1 // pred_check_branch
      %45 = sbr.rel (0) target = $region21
    $region20: #{tpu_custom_call.1} parent=1 // pred_region
      %46 = dma.done [#allocation6], 512
    $region21: #{tpu_custom_call.1} parent=1 // pred_fallthru
      _
    %v47 = vld [vmem:[#allocation2] sm:$0xff]
    %v48 = vld [vmem:[#allocation2 + $0x8] sm:$0xff]
    %v49 = vld [vmem:[#allocation5] sm:$0xff]
    %v50 = vld [vmem:[#allocation5 + $0x8] sm:$0xff]
    %v51 = vld [vmem:[#allocation5 + $0x10] sm:$0xff]
    %v52 = vld [vmem:[#allocation5 + $0x18] sm:$0xff]
    %v53 = vld [vmem:[%s2] sm:$0x1]
    %v55 = vlaneseq
    %v56 = vshrl.u32 %v55, 7
    %v57 = vsub.s32 0, %v56
    %v58 = vrot.slane %v53, %v57
    %vm60 = vcmask 261120
    %v62 = vsel %vm60, %v47, 0
    %v65 = vsel %vm60, %v48, 0
    %67 = vmatprep.subr.mxu0 0.0
    %68 = vmatpush1.msra.mxu0 0.0
    %69 = vmatprep.subr.mxu0 0.0
    %70 = vmatpush1.msra.mxu0 0.0
    %71 = vmatprep.subr.mxu0 0.0
    %72 = vmatpush1.msra.mxu0 0.0
    %73 = vmatprep.subr.mxu0 0.0
    %74 = vmatpush1.msra.mxu0 0.0
    %75 = vmatprep.subr.mxu0 0.0
    %76 = vmatpush1.msra.mxu0 0.0
    %77 = vmatprep.subr.mxu0 0.0
    %78 = vmatpush1.msra.mxu0 0.0
    %79 = vmatprep.subr.mxu0 0.0
    %80 = vmatpush1.msra.mxu0 0.0
    %81 = vmatprep.subr.mxu0 0.0
    %82 = vmatpush1.msra.mxu0 0.0
    %83 = vmatprep.subr.mxu0 0.0
    %84 = vmatpush1.msra.mxu0 0.0
    %85 = vmatprep.subr.mxu0 0.0
    %86 = vmatpush1.msra.mxu0 0.0
    %87 = vmatprep.subr.mxu0 0.0
    %88 = vmatpush1.msra.mxu0 0.0
    %89 = vmatprep.subr.mxu0 0.0
    %90 = vmatpush1.msra.mxu0 0.0
    %91 = vmatprep.subr.mxu0 0.0
    %92 = vmatpush1.msra.mxu0 %v52
    %93 = vmatprep.subr.mxu0 0.0
    %94 = vmatpush1.msra.mxu0 %v51
    %95 = vmatprep.subr.mxu0 0.0
    %96 = vmatpush1.msra.mxu0 %v50
    %97 = vmatprep.subr.mxu0 0.0
    %98 = vmatpush1.msra.mxu0 %v49
    %99 = vmatprep.subr.mxu0 0.0
    %100 = vmatpush2.msra.mxu0 0.0
    %101 = vmatprep.subr.mxu0 0.0
    %102 = vmatpush2.msra.mxu0 0.0
    %103 = vmatprep.subr.mxu0 0.0
    %104 = vmatpush2.msra.mxu0 0.0
    %105 = vmatprep.subr.mxu0 0.0
    %106 = vmatpush2.msra.mxu0 0.0
    %107 = vmatprep.subr.mxu0 0.0
    %108 = vmatpush2.msra.mxu0 0.0
    %109 = vmatprep.subr.mxu0 0.0
    %110 = vmatpush2.msra.mxu0 0.0
    %111 = vmatprep.subr.mxu0 0.0
    %112 = vmatpush2.msra.mxu0 0.0
    %113 = vmatprep.subr.mxu0 0.0
    %114 = vmatpush2.msra.mxu0 0.0
    %115 = vmatprep.subr.mxu0 0.0
    %116 = vmatpush2.msra.mxu0 0.0
    %117 = vmatprep.subr.mxu0 0.0
    %118 = vmatpush2.msra.mxu0 0.0
    %119 = vmatprep.subr.mxu0 0.0
    %120 = vmatpush2.msra.mxu0 0.0
    %121 = vmatprep.subr.mxu0 0.0
    %122 = vmatpush2.msra.mxu0 0.0
    %123 = vmatprep.subr.mxu0 0.0
    %124 = vmatpush2.msra.mxu0 0.0
    %125 = vmatprep.subr.mxu0 0.0
    %126 = vmatpush2.msra.mxu0 0.0
    %127 = vmatprep.subr.mxu0 0.0
    %128 = vmatpush2.msra.mxu0 0.0
    %129 = vmatprep.subr.mxu0 0.0
    %130 = vmatpush2.msra.mxu0 0.0
    %131 = vmatprep.mubr.f32.mxu0 0.0
    %132 = vmatmul.mubr.f32.gmra.mxu0 %v62
    %v133 = vpop.f32.mrf.mxu0
    %v134 = vadd.f32 %v58, %v133
    %v135 = vpop.f32.mrf.mxu0
    %136 = vmatprep.mubr.f32.mxu0 0.0
    %137 = vmatmul.mubr.f32.gmra.mxu0 %v65
    %v138 = vpop.f32.mrf.mxu0
    %v139 = vadd.f32 %v58, %v138
    %v140 = vpop.f32.mrf.mxu0
    %141 = vdwg.mxu0
    %142 = vst.msk [vmem:[#allocation7] sm:$0xff] %vm60, %v134
    %143 = vst.msk [vmem:[#allocation7 + $0x8] sm:$0xff] %vm60, %v139
    %146 = vrot.lane.b32.xlu0 %v134, 96
    %v147 = vpop.permute.xlu0 %146
    %148 = vrot.lane.b32.xlu0 %v139, 96
    %v149 = vpop.permute.xlu0 %148
    %152 = vst.msk [vmem:[#allocation8] sm:$0xff] %vm60, %v147
    %153 = vst.msk [vmem:[#allocation8 + $0x8] sm:$0xff] %vm60, %v149
    %154 = vrot.lane.b32.xlu0 %v134, 64
    %v155 = vpop.permute.xlu0 %154
    %156 = vrot.lane.b32.xlu0 %v139, 64
    %v157 = vpop.permute.xlu0 %156
    %160 = vst.msk [vmem:[#allocation10] sm:$0xff] %vm60, %v155
    %161 = vst.msk [vmem:[#allocation10 + $0x8] sm:$0xff] %vm60, %v157
    // Predicated region
    $region22: #{tpu_custom_call.1} parent=1 // pred_check
      _
    $region23: #{tpu_custom_call.1} parent=1 // pred_check_branch
      %163 = sbr.rel (0) target = $region25
    $region24: #{tpu_custom_call.1} parent=1 // pred_region
      %s165 = ssub.s32 256, 256
      %166 = vsyncadd [#allocation4], %s165
      %s167 = sshll.u32 [#allocation7], 4
      %s168 = int_to_ptr.vmem [resolvable:$true] %s167
      %173 = dma.vmem_to_hbm [thread:$0]  %s168, 256, %s3, [#allocation4], 128, 128, 8
    $region25: #{tpu_custom_call.1} parent=1 // pred_fallthru
      _
    // Predicated region
    $region26: #{tpu_custom_call.1} parent=1 // pred_check
      _
    $region27: #{tpu_custom_call.1} parent=1 // pred_check_branch
      %175 = sbr.rel (0) target = $region29
    $region28: #{tpu_custom_call.1} parent=1 // pred_region
      %s177 = ssub.s32 256, 256
      %178 = vsyncadd [#allocation9], %s177
      %s179 = sshll.u32 [#allocation8], 4
      %s180 = int_to_ptr.vmem [resolvable:$true] %s179
      %185 = dma.vmem_to_hbm [thread:$0]  %s180, 256, %s4, [#allocation9], 128, 128, 8
    $region29: #{tpu_custom_call.1} parent=1 // pred_fallthru
      _
    // Predicated region
    $region30: #{tpu_custom_call.1} parent=1 // pred_check
      _
    $region31: #{tpu_custom_call.1} parent=1 // pred_check_branch
      %187 = sbr.rel (0) target = $region33
    $region32: #{tpu_custom_call.1} parent=1 // pred_region
      %s189 = ssub.s32 256, 256
      %190 = vsyncadd [#allocation9], %s189
      %s191 = sshll.u32 [#allocation10], 4
      %s192 = int_to_ptr.vmem [resolvable:$true] %s191
      %197 = dma.vmem_to_hbm [thread:$0]  %s192, 256, %s5, [#allocation9], 128, 128, 8
    $region33: #{tpu_custom_call.1} parent=1 // pred_fallthru
      _
    // Predicated region
    $region34: #{tpu_custom_call.1} parent=1 // pred_check
      _
    $region35: #{tpu_custom_call.1} parent=1 // pred_check_branch
      %199 = sbr.rel (0) target = $region37
    $region36: #{tpu_custom_call.1} parent=1 // pred_region
      %200 = dma.done [#allocation4], 256
    $region37: #{tpu_custom_call.1} parent=1 // pred_fallthru
      _
    // Predicated region
    $region38: #{tpu_custom_call.1} parent=1 // pred_check
      _
    $region39: #{tpu_custom_call.1} parent=1 // pred_check_branch
      %202 = sbr.rel (0) target = $region41
    $region40: #{tpu_custom_call.1} parent=1 // pred_region
      %203 = dma.done [#allocation9], 256
    $region41: #{tpu_custom_call.1} parent=1 // pred_fallthru
      _
    // Predicated region
    $region42: #{tpu_custom_call.1} parent=1 // pred_check
      _
    $region43: #{tpu_custom_call.1} parent=1 // pred_check_branch
      %205 = sbr.rel (0) target = $region45
    $region44: #{tpu_custom_call.1} parent=1 // pred_region
      %206 = dma.done [#allocation9], 256
    $region45: #{tpu_custom_call.1} parent=1 // pred_fallthru
      _
    %207 = vsyncpa [#allocation3], 1
    %208 = vsyncpa [#allocation6], 1
    %209 = vsyncpa [#allocation4], 1
    %210 = vsyncpa [#allocation9], 1

</llo_original>
